<compile_context>
chip_gen: v7x
topology: tpu7x:2x2x1
jax: 0.10.0
libtpu: 0.0.40
codegen_flags: <defaults>
</compile_context>

<pallas_src>
import functools

import jax
import jax.numpy as jnp
from jax.experimental import pallas as pl
from jax.experimental.pallas import tpu as pltpu

H_CLS = 512    # cls_mlp hidden width
H_ATT = 128    # att_mlp hidden width
_LANE = 128
_MAX_TILE = 4096

_VMEM_LIMIT = None


def _round_up(x, m):
    return ((x + m - 1) // m) * m


def _cdiv(a, b):
    return -(-a // b)


def _vmem_limit_bytes():
    """Per-generation VMEM cap: ~3/4 of physical (v5e/v6e ~96 MiB, v7x ~48 MiB)."""
    global _VMEM_LIMIT
    if _VMEM_LIMIT is None:
        try:
            phys = int(pltpu.get_tpu_info().vmem_capacity_bytes)
            _VMEM_LIMIT = min((phys * 3) // 4, 100 * 1024 * 1024)
        except Exception:
            _VMEM_LIMIT = 32 * 1024 * 1024   # conservative, safe on every generation
    return _VMEM_LIMIT


def _pick_tile(n, d, h_cat, w_itemsize, *, want_multi_step):
    """Largest batch tile (multiple of 128) whose footprint fits the VMEM budget."""
    budget = (2 * _vmem_limit_bytes()) // 3
    # Resident weights, conservatively counted double-buffered (see Buffered(1) TODO).
    weights = 2 * (d * h_cat * w_itemsize + 2 * h_cat * 4)
    avail = budget - weights
    # x double-buffer + ~3 f32 copies of the hidden row (h, activation, product) + outputs.
    per_row = 2 * d * 4 + 3 * h_cat * 4 + 64
    tile = avail // per_row if avail > 0 else _LANE
    tile = max(_LANE, min(tile, _MAX_TILE))
    tile = min(tile, _round_up(n, _LANE))
    if want_multi_step and n > 2 * _LANE:
        # >=2 grid steps so dimension_semantics=("parallel",) can use both v7x cores.
        tile = min(tile, _round_up(_cdiv(n, 2), _LANE))
    return max(_LANE, (tile // _LANE) * _LANE)


# ----------------------------------------------------------------------------
# Kernels
# ----------------------------------------------------------------------------
def _cls_kernel(x_ref, w1_ref, b1_ref, w2r_ref, b2_ref, out_ref):
    """out_row = (LeakyReLU_{0.1}(x @ W1 + b1) @ W2 + b2) stored lane-dense (1, tile)."""
    x = x_ref[...].astype(w1_ref.dtype)            # in-kernel cast (bf16 fast path)
    h = jnp.dot(x, w1_ref[...], preferred_element_type=jnp.float32) + b1_ref[...]
    h = jnp.where(h >= 0.0, h, 0.1 * h)            # LeakyReLU(0.1); dropout = identity
    # (512,1) contraction as VPU mul + XLU lane-reduce; relayout to a lane-dense row.
    out = jnp.sum(h * w2r_ref[...], axis=-1) + b2_ref[0]          # (tile,)
    out_ref[...] = out.reshape(1, -1).astype(out_ref.dtype)       # (1, tile)


def _att_cls_kernel(x_ref, w1_ref, b1_ref, w2r_ref, b2_ref, logit_ref, score_ref):
    """One wide matmul for cls+att hidden; emits lane-dense logits & raw att scores."""
    x = x_ref[...].astype(w1_ref.dtype)
    h = jnp.dot(x, w1_ref[...], preferred_element_type=jnp.float32) + b1_ref[...]
    h_cls = h[:, :H_CLS]                           # 128-aligned slices
    h_att = h[:, H_CLS:]
    h_cls = jnp.where(h_cls >= 0.0, h_cls, 0.1 * h_cls)
    h_att = jnp.tanh(h_att)
    w2r = w2r_ref[...]                             # (1, 640)
    logit = jnp.sum(h_cls * w2r[:, :H_CLS], axis=-1) + b2_ref[0]
    score = (jnp.sum(h_att * w2r[:, H_CLS:], axis=-1) + b2_ref[1]) * 2.0   # == /0.5
    logit_ref[...] = logit.reshape(1, -1).astype(logit_ref.dtype)
    score_ref[...] = score.reshape(1, -1).astype(score_ref.dtype)


def _att_cls_softmax_kernel(x_ref, w1_ref, b1_ref, w2r_ref, b2_ref, logit_ref, att_ref):
    """Single-tile fused path: wide matmul + both heads + stabilized softmax(dim=0)."""
    x = x_ref[...].astype(w1_ref.dtype)
    h = jnp.dot(x, w1_ref[...], preferred_element_type=jnp.float32) + b1_ref[...]
    h_cls = h[:, :H_CLS]
    h_att = h[:, H_CLS:]
    h_cls = jnp.where(h_cls >= 0.0, h_cls, 0.1 * h_cls)
    h_att = jnp.tanh(h_att)
    w2r = w2r_ref[...]
    logit = jnp.sum(h_cls * w2r[:, :H_CLS], axis=-1) + b2_ref[0]
    score = (jnp.sum(h_att * w2r[:, H_CLS:], axis=-1) + b2_ref[1]) * 2.0
    score = score.reshape(1, -1)                   # (1, N) lane-dense; block == full array
    score = score - jnp.max(score, axis=-1, keepdims=True)
    e = jnp.exp(score)
    att = e / jnp.sum(e, axis=-1, keepdims=True)   # exact division (scalar denom)
    logit_ref[...] = logit.reshape(1, -1).astype(logit_ref.dtype)
    att_ref[...] = att.astype(att_ref.dtype)


def _softmax_row_kernel(n, s_ref, o_ref):
    """Stabilized softmax over a lane-dense (1, n_pad) score row; lanes >= n masked."""
    s = s_ref[...]
    lane = jax.lax.broadcasted_iota(jnp.int32, s.shape, 1)
    s = jnp.where(lane < n, s, -jnp.inf)           # padded (garbage) lanes -> zero weight
    s = s - jnp.max(s, axis=-1, keepdims=True)
    e = jnp.exp(s)
    o_ref[...] = (e / jnp.sum(e, axis=-1, keepdims=True)).astype(o_ref.dtype)


# ----------------------------------------------------------------------------
# pallas_call wrappers
# ----------------------------------------------------------------------------
def _full_spec(shape):
    return pl.BlockSpec(shape, lambda: (0, 0))


def _tiled_call(kernel, x, w1, b1, w2row, b2s, n_out):
    """Batch-tiled call: x streams over a 'parallel' N grid (cdiv, no padding),
    weights stay VMEM-resident, outputs are lane-dense (1, n_pad) rows."""
    n, d = x.shape
    h_cat = w1.shape[1]
    vmem_limit = _vmem_limit_bytes()
    tile = _pick_tile(n, d, h_cat, jnp.dtype(w1.dtype).itemsize, want_multi_step=True)
    if n <= tile:
        tile = n                                   # single full-array block
    grid_n = _cdiv(n, tile)
    n_pad = grid_n * tile

    out_shape = tuple(jax.ShapeDtypeStruct((1, n_pad), jnp.float32) for _ in range(n_out))
    out_specs = tuple(pl.BlockSpec((1, tile), lambda i: (0, i)) for _ in range(n_out))

    outs = pl.pallas_call(
        kernel,
        out_shape=out_shape,
        grid=(grid_n,),
        in_specs=[
            pl.BlockSpec((tile, d), lambda i: (i, 0)),           # x: streamed batch tiles
            pl.BlockSpec((d, h_cat), lambda i: (0, 0)),          # W1: VMEM-resident
            pl.BlockSpec((1, h_cat), lambda i: (0, 0)),          # b1
            pl.BlockSpec((1, h_cat), lambda i: (0, 0)),          # W2 row(s)
            pl.BlockSpec(memory_space=pltpu.MemorySpace.SMEM),   # output-bias scalars
        ],
        out_specs=out_specs,
        compiler_params=pltpu.CompilerParams(
            dimension_semantics=("parallel",),
            vmem_limit_bytes=vmem_limit,
        ),
    )(x, w1, b1, w2row, b2s)
    if not isinstance(outs, (tuple, list)):
        outs = (outs,)
    return tuple(outs)


def _fused_single_call(x, w1, b1, w2row, b2s):
    """Whole batch in one tile: logits + softmaxed attention from a single kernel."""
    n, d = x.shape
    h_cat = w1.shape[1]
    row = jax.ShapeDtypeStruct((1, n), jnp.float32)
    return pl.pallas_call(
        _att_cls_softmax_kernel,
        out_shape=(row, row),
        grid=(),
        in_specs=[
            _full_spec((n, d)),
            _full_spec((d, h_cat)),
            _full_spec((1, h_cat)),
            _full_spec((1, h_cat)),
            pl.BlockSpec(memory_space=pltpu.MemorySpace.SMEM),
        ],
        out_specs=(_full_spec((1, n)), _full_spec((1, n))),
        compiler_params=pltpu.CompilerParams(vmem_limit_bytes=_vmem_limit_bytes()),
    )(x, w1, b1, w2row, b2s)


def _softmax_row(score_row, n):
    """Softmax over a lane-dense (1, n_pad) score row (trivially VMEM-resident)."""
    n_pad = score_row.shape[1]
    return pl.pallas_call(
        functools.partial(_softmax_row_kernel, n),
        out_shape=jax.ShapeDtypeStruct((1, n_pad), jnp.float32),
        grid=(),
        in_specs=[_full_spec((1, n_pad))],
        out_specs=_full_spec((1, n_pad)),
        compiler_params=pltpu.CompilerParams(vmem_limit_bytes=_vmem_limit_bytes()),
    )(score_row)


# ----------------------------------------------------------------------------
# jitted forwards (shape-specialized; reshape/slice fuse with the kernels)
# ----------------------------------------------------------------------------
def _forward_cls_impl(x, w1, b1, w2row, b2s):
    n = x.shape[0]
    (row,) = _tiled_call(_cls_kernel, x, w1, b1, w2row, b2s, n_out=1)
    return row[0, :n].reshape(n, 1)


def _forward_att_impl(x, w1, b1, w2row, b2s):
    n, d = x.shape
    h_cat = w1.shape[1]
    fused_cap = _pick_tile(n, d, h_cat, jnp.dtype(w1.dtype).itemsize,
                           want_multi_step=False)
    if n <= fused_cap:
        # One kernel incl. softmax: no second launch, no scores HBM round-trip.
        log_row, att_row = _fused_single_call(x, w1, b1, w2row, b2s)
    else:
        log_row, score_row = _tiled_call(_att_cls_kernel, x, w1, b1, w2row, b2s, n_out=2)
        att_row = _softmax_row(score_row, n)
    return log_row[0, :n].reshape(n, 1), att_row[0, :n].reshape(n, 1)


_forward_cls = jax.jit(_forward_cls_impl)
_forward_att = jax.jit(_forward_att_impl)


# ----------------------------------------------------------------------------
# Module-equivalent wrapper
# ----------------------------------------------------------------------------
class Learner:
    """JAX/Pallas port of the PyTorch Learner module (eval-mode forward)."""

    def __init__(self, input_dim, drop_p=0.3, use_attention=False, *,
                 key, mxu_dtype=jnp.float32):
        self.use_attention = use_attention
        self.drop_p = drop_p            # eval mode: dropout == identity
        self.mxu_dtype = mxu_dtype
        k = jax.random.split(key, 8)
        # Weights stored (in, out) so kernels compute x @ W + b directly.
        self.cls_w1 = 0.02 * jax.random.normal(k[0], (input_dim, H_CLS), jnp.float32)
        self.cls_b1 = 0.02 * jax.random.normal(k[1], (1, H_CLS), jnp.float32)
        self.cls_w2 = 0.02 * jax.random.normal(k[2], (H_CLS, 1), jnp.float32)
        self.cls_b2 = 0.02 * jax.random.normal(k[3], (1, 1), jnp.float32)
        # Kernel-side parameter forms: MXU-dtype W1 (cast ONCE here, not per call),
        # row form of W2 for the VPU/XLU contraction, output biases as SMEM scalars.
        self.cls_w1_mxu = self.cls_w1.astype(mxu_dtype)
        self.cls_w2_row = self.cls_w2.T                       # (1, 512)
        self.cls_b2_vec = self.cls_b2.reshape(1)              # (1,)
        if use_attention:
            self.att_w1 = 0.02 * jax.random.normal(k[4], (input_dim, H_ATT), jnp.float32)
            self.att_b1 = 0.02 * jax.random.normal(k[5], (1, H_ATT), jnp.float32)
            self.att_w2 = 0.02 * jax.random.normal(k[6], (H_ATT, 1), jnp.float32)
            self.att_b2 = 0.02 * jax.random.normal(k[7], (1, 1), jnp.float32)
            # Fused parameters: one wide first layer, one (1, 640) second-layer row.
            self.w1_cat_mxu = jnp.concatenate(
                [self.cls_w1, self.att_w1], axis=1).astype(mxu_dtype)              # (D, 640)
            self.b1_cat = jnp.concatenate([self.cls_b1, self.att_b1], axis=1)      # (1, 640)
            self.w2_row = jnp.concatenate([self.cls_w2.T, self.att_w2.T], axis=1)  # (1, 640)
            self.b2_vec = jnp.concatenate([self.cls_b2.reshape(1),
                                           self.att_b2.reshape(1)])                # (2,)

    def __call__(self, x, *, return_attention=False):
        if not self.use_attention:
            return _forward_cls(x, self.cls_w1_mxu, self.cls_b1,
                                self.cls_w2_row, self.cls_b2_vec)
        log, att = _forward_att(x, self.w1_cat_mxu, self.b1_cat,
                                self.w2_row, self.b2_vec)
        if return_attention:
            return (log, att)
        return log


# ----------------------------------------------------------------------------
# Pure-JAX reference (mirrors the PyTorch eval-mode forward)
# ----------------------------------------------------------------------------
def _ref_cls(m, x):
    h = x @ m.cls_w1 + m.cls_b1
    h = jnp.where(h >= 0.0, h, 0.1 * h)
    return h @ m.cls_w2 + m.cls_b2


def _ref_att(m, x):
    s = (jnp.tanh(x @ m.att_w1 + m.att_b1) @ m.att_w2 + m.att_b2) / 0.5
    return jax.nn.softmax(s, axis=0)


if __name__ == "__main__":
    key = jax.random.PRNGKey(0)
    k_param, k_x, k_x2, k_x3 = jax.random.split(key, 4)

    N, INPUT_DIM = 8, 32
    x = jax.random.normal(k_x, (N, INPUT_DIM), jnp.float32)

    # Default-config module (use_attention=False): forward == cls_mlp(x)
    model = Learner(INPUT_DIM, drop_p=0.3, use_attention=False, key=k_param)
    out = jax.block_until_ready(model(x))
    assert out.shape == (N, 1)
    assert jnp.allclose(out, _ref_cls(model, x), atol=1e-4, rtol=1e-4)

    # Attention-enabled variant (single-tile fused kernel incl. softmax)
    model_att = Learner(INPUT_DIM, drop_p=0.3, use_attention=True, key=k_param)
    log, att = jax.block_until_ready(model_att(x, return_attention=True))
    assert log.shape == (N, 1) and att.shape == (N, 1)
    assert jnp.allclose(log, _ref_cls(model_att, x), atol=1e-4, rtol=1e-4)
    assert jnp.allclose(att, _ref_att(model_att, x), atol=1e-4, rtol=1e-4)
    assert jnp.allclose(jnp.sum(att), 1.0, atol=1e-3)

    # Non-multiple-of-128 batch: cls path takes the tiled (grid>=2) cdiv route,
    # attention path still fits one fused tile.
    N2 = 1100
    x2 = jax.random.normal(k_x2, (N2, INPUT_DIM), jnp.float32)
    out2 = jax.block_until_ready(model(x2))
    assert out2.shape == (N2, 1)
    assert jnp.allclose(out2, _ref_cls(model, x2), atol=1e-4, rtol=1e-4)
    log2, att2 = jax.block_until_ready(model_att(x2, return_attention=True))
    assert log2.shape == (N2, 1) and att2.shape == (N2, 1)
    assert jnp.allclose(log2, _ref_cls(model_att, x2), atol=1e-4, rtol=1e-4)
    assert jnp.allclose(att2, _ref_att(model_att, x2), atol=1e-4, rtol=1e-4)
    assert jnp.allclose(jnp.sum(att2), 1.0, atol=1e-3)

    # Batch larger than the max fused tile: tiled two-output kernel + separate
    # lane-dense softmax kernel (exercises ragged last block + -inf masking).
    N3 = 4500
    x3 = jax.random.normal(k_x3, (N3, INPUT_DIM), jnp.float32)
    log3, att3 = jax.block_until_ready(model_att(x3, return_attention=True))
    assert log3.shape == (N3, 1) and att3.shape == (N3, 1)
    assert jnp.allclose(log3, _ref_cls(model_att, x3), atol=1e-4, rtol=1e-4)
    assert jnp.allclose(att3, _ref_att(model_att, x3), atol=1e-4, rtol=1e-4)
    assert jnp.allclose(jnp.sum(att3), 1.0, atol=1e-3)

    # bf16 MXU-input fast path (x cast in-kernel; elementwise math stays f32)
    model_bf16 = Learner(INPUT_DIM, drop_p=0.3, use_attention=True, key=k_param,
                         mxu_dtype=jnp.bfloat16)
    log_b, att_b = jax.block_until_ready(model_bf16(x, return_attention=True))
    assert jnp.allclose(log_b, _ref_cls(model_bf16, x), atol=2e-2, rtol=2e-2)
    assert jnp.allclose(jnp.sum(att_b), 1.0, atol=1e-3)

    print("KERNEL_OK")
</pallas_src>

<mosaic_0001>
module attributes {stable_mosaic.version = 11 : i64} {
  func.func @_cls_kernel(%arg0: i32, %arg1: memref<8x32xf32, #tpu.memory_space<vmem>>, %arg2: memref<32x512xf32, #tpu.memory_space<vmem>>, %arg3: memref<1x512xf32, #tpu.memory_space<vmem>>, %arg4: memref<1x512xf32, #tpu.memory_space<vmem>>, %arg5: memref<1xf32, #tpu.memory_space<smem>>, %arg6: memref<1x8xf32, #tpu.memory_space<vmem>>) attributes {dimension_semantics = [#tpu.dimension_semantics<parallel>], iteration_bounds = array<i64: 1>, scalar_prefetch = 0 : i64, scratch_operands = 0 : i64, tpu.core_type = #tpu.core_type<tc>, window_params = [{transform_indices = @transform_0, window_bounds = array<i64: 8, 32>}, {pipeline_mode = #tpu.pipeline_mode<synchronous>, transform_indices = @transform_1, window_bounds = array<i64: 32, 512>}, {pipeline_mode = #tpu.pipeline_mode<synchronous>, transform_indices = @transform_2, window_bounds = array<i64: 1, 512>}, {pipeline_mode = #tpu.pipeline_mode<synchronous>, transform_indices = @transform_3, window_bounds = array<i64: 1, 512>}, {transform_indices = @transform_4, window_bounds = array<i64: 1>}, {transform_indices = @transform_5, window_bounds = array<i64: 1, 8>}]} {
    %c0 = arith.constant 0 : index
    %c0_0 = arith.constant 0 : index
    %0 = vector.load %arg1[%c0, %c0_0] : memref<8x32xf32, #tpu.memory_space<vmem>>, vector<8x32xf32>
    %c0_1 = arith.constant 0 : index
    %c0_2 = arith.constant 0 : index
    %1 = vector.load %arg2[%c0_1, %c0_2] : memref<32x512xf32, #tpu.memory_space<vmem>>, vector<32x512xf32>
    %cst = arith.constant dense<0.000000e+00> : vector<8x512xf32>
    %2 = tpu.matmul %0, %1, %cst {dimension_numbers = #tpu.dot_dimension_numbers<[1], [0], [0], [1], [0, 0, 1, 1], [], []>} : vector<8x32xf32>, vector<32x512xf32>, vector<8x512xf32> -> vector<8x512xf32>
    %c0_3 = arith.constant 0 : index
    %c0_4 = arith.constant 0 : index
    %3 = vector.load %arg3[%c0_3, %c0_4] : memref<1x512xf32, #tpu.memory_space<vmem>>, vector<1x512xf32>
    %4 = vector.broadcast %3 : vector<1x512xf32> to vector<8x512xf32>
    %5 = arith.addf %2, %4 : vector<8x512xf32>
    %cst_5 = arith.constant 0.000000e+00 : f32
    %6 = vector.broadcast %cst_5 : f32 to vector<8x512xf32>
    %7 = arith.cmpf oge, %5, %6 : vector<8x512xf32>
    %cst_6 = arith.constant 1.000000e-01 : f32
    %8 = vector.broadcast %cst_6 : f32 to vector<8x512xf32>
    %9 = arith.mulf %8, %5 : vector<8x512xf32>
    %10 = arith.select %7, %5, %9 : vector<8x512xi1>, vector<8x512xf32>
    %c0_7 = arith.constant 0 : index
    %c0_8 = arith.constant 0 : index
    %11 = vector.load %arg4[%c0_7, %c0_8] : memref<1x512xf32, #tpu.memory_space<vmem>>, vector<1x512xf32>
    %12 = vector.broadcast %11 : vector<1x512xf32> to vector<8x512xf32>
    %13 = arith.mulf %10, %12 : vector<8x512xf32>
    %cst_9 = arith.constant dense<0.000000e+00> : vector<8xf32>
    %14 = vector.multi_reduction <add>, %13, %cst_9 [1] : vector<8x512xf32> to vector<8xf32>
    %c0_10 = arith.constant 0 : index
    %15 = memref.load %arg5[%c0_10] : memref<1xf32, #tpu.memory_space<smem>>
    %16 = vector.broadcast %15 : f32 to vector<8xf32>
    %17 = arith.addf %14, %16 : vector<8xf32>
    %18 = vector.shape_cast %17 : vector<8xf32> to vector<1x8xf32>
    %c0_11 = arith.constant 0 : index
    %c0_12 = arith.constant 0 : index
    %19 = vector.load %arg6[%c0_11, %c0_12] : memref<1x8xf32, #tpu.memory_space<vmem>>, vector<1x8xf32>
    tpu.vector_store %arg6[%c0_11, %c0_12], %18 {strides = array<i32>} : memref<1x8xf32, #tpu.memory_space<vmem>>, vector<1x8xf32>,
    return
  }
  func.func @transform_0(%arg0: i32) -> (i32, i32) {
    %c0_i32 = arith.constant 0 : i32
    %c0_i32_0 = arith.constant 0 : i32
    return %arg0, %c0_i32 : i32, i32
  }
  func.func @transform_1(%arg0: i32) -> (i32, i32) {
    %c0_i32 = arith.constant 0 : i32
    %c0_i32_0 = arith.constant 0 : i32
    %c0_i32_1 = arith.constant 0 : i32
    return %c0_i32, %c0_i32_0 : i32, i32
  }
  func.func @transform_2(%arg0: i32) -> (i32, i32) {
    %c0_i32 = arith.constant 0 : i32
    %c0_i32_0 = arith.constant 0 : i32
    %c0_i32_1 = arith.constant 0 : i32
    return %c0_i32, %c0_i32_0 : i32, i32
  }
  func.func @transform_3(%arg0: i32) -> (i32, i32) {
    %c0_i32 = arith.constant 0 : i32
    %c0_i32_0 = arith.constant 0 : i32
    %c0_i32_1 = arith.constant 0 : i32
    return %c0_i32, %c0_i32_0 : i32, i32
  }
  func.func @transform_4(%arg0: i32) -> i32 {
    %c0_i32 = arith.constant 0 : i32
    %c0_i32_0 = arith.constant 0 : i32
    return %c0_i32 : i32
  }
  func.func @transform_5(%arg0: i32) -> (i32, i32) {
    %c0_i32 = arith.constant 0 : i32
    %c0_i32_0 = arith.constant 0 : i32
    return %c0_i32, %arg0 : i32, i32
  }
}

</mosaic_0001>

<llo_original>
// kernel: _forward_cls_impl.1
$region0: #{_forward_cls_impl.1}
  #allocation0 [shape = 'u32[]', space=smem, size = 0x4, offset = 0x4, fixed_abs, tag = 'smem constant byte address 0x4 - core index']
  #allocation1 [shape = 'u32[144,128]{1,0:T(1,128)}', space=vmem, size = 0x12000, scoped, tag = 'internal scratch']
  #allocation2 [shape = 'f32[1]{0:T(128)S(6)}', space=smem, size = 0x200, scoped, tag = 'scoped memory for _forward_cls_impl.1']
  %s0 = inlined_call_operand.hbm [shape: f32[8,32], index: 0, kind: input, shape index: {}]
  %s1 = inlined_call_operand.hbm [shape: f32[32,512], index: 1, kind: input, shape index: {}]
  %s2 = inlined_call_operand.vmem [shape: f32[1,512], index: 2, kind: input, shape index: {}]
  %s3 = inlined_call_operand.vmem [shape: f32[1,512], index: 3, kind: input, shape index: {}]
  %s4 = inlined_call_operand.<no memory space> [shape: f32[1], index: 4, kind: input, shape index: {}]
  %s5 = inlined_call_operand.hbm [shape: f32[1,8], index: 5, kind: output, shape index: {}]
  %s6 = sld [smem:[#allocation0]]
  $region38: #{_forward_cls_impl.1} parent=0
    _
  %s8 = ssub.s32 1, %s6
  %s9 = scalar_select 0, %s8, %s6
  %10 = sst [smem:[#allocation2]] %s4
  $region1: #{_forward_cls_impl.1} parent=0
    #allocation3 [shape = 'u8[4096]{0}', space=vmem, size = 0x1000, scoped, tag = 'input window, operand 0, single buffered']
    #allocation4 [shape = 's32[1]{0}', space=sflag, size = 0x4, scoped, tag = 'scoped memory for _forward_cls_impl.1']
    #allocation5 [shape = 's32[1]{0}', space=sflag, size = 0x4, scoped, tag = 'scoped memory for _forward_cls_impl.1']
    #allocation6 [shape = 'u8[65536]{0}', space=vmem, size = 0x10000, scoped, tag = 'input window, operand 1, single buffered']
    #allocation7 [shape = 's32[1]{0}', space=sflag, size = 0x4, scoped, tag = 'scoped memory for _forward_cls_impl.1']
    #allocation8 [shape = 'u8[512]{0}', space=vmem, size = 0x400, scoped, tag = 'output window, operand 0, single buffered']
    %11 = vsyncpa [#allocation4], 0
    %12 = vsyncpa [#allocation7], 0
    %13 = vsyncpa [#allocation5], 0
    // Predicated region
    $region2: #{_forward_cls_impl.1} parent=1 // pred_check
      _
    $region3: #{_forward_cls_impl.1} parent=1 // pred_check_branch
      %15 = sbr.rel (0) target = $region5
    $region4: #{_forward_cls_impl.1} parent=1 // pred_region
      %s17 = ssub.s32 128, 128
      %18 = vsyncadd [#allocation4], %s17
      %s20 = sshll.u32 [#allocation3], 4
      %s21 = int_to_ptr.vmem [resolvable:$true] %s20
      %23 = dma.hbm_to_vmem [thread:$0]  %s0, 128, %s21, [#allocation4]
    $region5: #{_forward_cls_impl.1} parent=1 // pred_fallthru
      _
    // Predicated region
    $region6: #{_forward_cls_impl.1} parent=1 // pred_check
      _
    $region7: #{_forward_cls_impl.1} parent=1 // pred_check_branch
      %25 = sbr.rel (0) target = $region9
    $region8: #{_forward_cls_impl.1} parent=1 // pred_region
      %s27 = ssub.s32 2048, 2048
      %28 = vsyncadd [#allocation7], %s27
      %s29 = sshll.u32 [#allocation6], 4
      %s30 = int_to_ptr.vmem [resolvable:$true] %s29
      %35 = dma.hbm_to_vmem [thread:$0]  %s1, 2048, %s30, [#allocation7], 512, 512, 32
    $region9: #{_forward_cls_impl.1} parent=1 // pred_fallthru
      _
    // Predicated region
    $region10: #{_forward_cls_impl.1} parent=1 // pred_check
      _
    $region11: #{_forward_cls_impl.1} parent=1 // pred_check_branch
      %37 = sbr.rel (0) target = $region13
    $region12: #{_forward_cls_impl.1} parent=1 // pred_region
      _
    $region13: #{_forward_cls_impl.1} parent=1 // pred_fallthru
      _
    // Predicated region
    $region14: #{_forward_cls_impl.1} parent=1 // pred_check
      _
    $region15: #{_forward_cls_impl.1} parent=1 // pred_check_branch
      %39 = sbr.rel (0) target = $region17
    $region16: #{_forward_cls_impl.1} parent=1 // pred_region
      _
    $region17: #{_forward_cls_impl.1} parent=1 // pred_fallthru
      _
    // Predicated region
    $region18: #{_forward_cls_impl.1} parent=1 // pred_check
      _
    $region19: #{_forward_cls_impl.1} parent=1 // pred_check_branch
      %41 = sbr.rel (0) target = $region21
    $region20: #{_forward_cls_impl.1} parent=1 // pred_region
      _
    $region21: #{_forward_cls_impl.1} parent=1 // pred_fallthru
      _
    // Predicated region
    $region22: #{_forward_cls_impl.1} parent=1 // pred_check
      _
    $region23: #{_forward_cls_impl.1} parent=1 // pred_check_branch
      %43 = sbr.rel (0) target = $region25
    $region24: #{_forward_cls_impl.1} parent=1 // pred_region
      %44 = dma.done [#allocation4], 128
    $region25: #{_forward_cls_impl.1} parent=1 // pred_fallthru
      _
    // Predicated region
    $region26: #{_forward_cls_impl.1} parent=1 // pred_check
      _
    $region27: #{_forward_cls_impl.1} parent=1 // pred_check_branch
      %46 = sbr.rel (0) target = $region29
    $region28: #{_forward_cls_impl.1} parent=1 // pred_region
      %47 = dma.done [#allocation7], 2048
    $region29: #{_forward_cls_impl.1} parent=1 // pred_fallthru
      _
    %v48 = vld [vmem:[#allocation3] sm:$0xff]
    %v49 = vld [vmem:[#allocation6] sm:$0xff]
    %v50 = vld [vmem:[#allocation6 + $0x8] sm:$0xff]
    %v51 = vld [vmem:[#allocation6 + $0x10] sm:$0xff]
    %v52 = vld [vmem:[#allocation6 + $0x18] sm:$0xff]
    %v53 = vld [vmem:[#allocation6 + $0x20] sm:$0xff]
    %v54 = vld [vmem:[#allocation6 + $0x28] sm:$0xff]
    %v55 = vld [vmem:[#allocation6 + $0x30] sm:$0xff]
    %v56 = vld [vmem:[#allocation6 + $0x38] sm:$0xff]
    %v57 = vld [vmem:[#allocation6 + $0x40] sm:$0xff]
    %v58 = vld [vmem:[#allocation6 + $0x48] sm:$0xff]
    %v59 = vld [vmem:[#allocation6 + $0x50] sm:$0xff]
    %v60 = vld [vmem:[#allocation6 + $0x58] sm:$0xff]
    %v61 = vld [vmem:[#allocation6 + $0x60] sm:$0xff]
    %v62 = vld [vmem:[#allocation6 + $0x68] sm:$0xff]
    %v63 = vld [vmem:[#allocation6 + $0x70] sm:$0xff]
    %v64 = vld [vmem:[#allocation6 + $0x78] sm:$0xff]
    %v65 = vld [vmem:[%s2] sm:$0xf]
    %v67 = vlaneseq
    %v68 = vshrl.u32 %v67, 7
    %v69 = vsub.s32 0, %v68
    %v70 = vrot.slane %v65, %v69
    %v71 = vlaneseq
    %v72 = vshrl.u32 %v71, 7
    %v73 = vsub.s32 1, %v72
    %v74 = vrot.slane %v65, %v73
    %v75 = vlaneseq
    %v76 = vshrl.u32 %v75, 7
    %v77 = vsub.s32 2, %v76
    %v78 = vrot.slane %v65, %v77
    %v79 = vlaneseq
    %v80 = vshrl.u32 %v79, 7
    %v81 = vsub.s32 3, %v80
    %v82 = vrot.slane %v65, %v81
    %vm87 = vcmask 261120
    %v89 = vsel %vm87, %v48, 0
    %91 = vmatprep.subr.mxu0 %v50
    %92 = vmatpush1.msra.mxu0 %v49
    %93 = vmatprep.subr.mxu0 %v54
    %94 = vmatpush1.msra.mxu0 %v53
    %95 = vmatprep.subr.mxu0 %v58
    %96 = vmatpush1.msra.mxu0 %v57
    %97 = vmatprep.subr.mxu0 %v62
    %98 = vmatpush1.msra.mxu0 %v61
    %99 = vmatprep.subr.mxu0 0.0
    %100 = vmatpush1.msra.mxu0 0.0
    %101 = vmatprep.subr.mxu0 0.0
    %102 = vmatpush1.msra.mxu0 0.0
    %103 = vmatprep.subr.mxu0 0.0
    %104 = vmatpush1.msra.mxu0 0.0
    %105 = vmatprep.subr.mxu0 0.0
    %106 = vmatpush1.msra.mxu0 0.0
    %107 = vmatprep.subr.mxu0 0.0
    %108 = vmatpush1.msra.mxu0 0.0
    %109 = vmatprep.subr.mxu0 0.0
    %110 = vmatpush1.msra.mxu0 0.0
    %111 = vmatprep.subr.mxu0 0.0
    %112 = vmatpush1.msra.mxu0 0.0
    %113 = vmatprep.subr.mxu0 0.0
    %114 = vmatpush1.msra.mxu0 0.0
    %115 = vmatprep.subr.mxu0 0.0
    %116 = vmatpush1.msra.mxu0 0.0
    %117 = vmatprep.subr.mxu0 0.0
    %118 = vmatpush1.msra.mxu0 0.0
    %119 = vmatprep.subr.mxu0 0.0
    %120 = vmatpush1.msra.mxu0 0.0
    %121 = vmatprep.subr.mxu0 0.0
    %122 = vmatpush1.msra.mxu0 0.0
    %123 = vmatprep.subr.mxu0 0.0
    %124 = vmatpush1.msra.mxu0 0.0
    %125 = vmatprep.subr.mxu0 0.0
    %126 = vmatpush1.msra.mxu0 0.0
    %127 = vmatprep.subr.mxu0 0.0
    %128 = vmatpush1.msra.mxu0 0.0
    %129 = vmatprep.subr.mxu0 0.0
    %130 = vmatpush1.msra.mxu0 0.0
    %131 = vmatprep.subr.mxu0 0.0
    %132 = vmatpush1.msra.mxu0 0.0
    %133 = vmatprep.subr.mxu0 0.0
    %134 = vmatpush1.msra.mxu0 0.0
    %135 = vmatprep.subr.mxu0 0.0
    %136 = vmatpush1.msra.mxu0 0.0
    %137 = vmatprep.subr.mxu0 0.0
    %138 = vmatpush1.msra.mxu0 0.0
    %139 = vmatprep.subr.mxu0 0.0
    %140 = vmatpush1.msra.mxu0 0.0
    %141 = vmatprep.subr.mxu0 0.0
    %142 = vmatpush1.msra.mxu0 0.0
    %143 = vmatprep.subr.mxu0 0.0
    %144 = vmatpush1.msra.mxu0 0.0
    %145 = vmatprep.subr.mxu0 0.0
    %146 = vmatpush1.msra.mxu0 0.0
    %147 = vmatprep.subr.mxu0 0.0
    %148 = vmatpush1.msra.mxu0 0.0
    %149 = vmatprep.subr.mxu0 0.0
    %150 = vmatpush1.msra.mxu0 0.0
    %151 = vmatprep.subr.mxu0 0.0
    %152 = vmatpush1.msra.mxu0 0.0
    %153 = vmatprep.subr.mxu0 0.0
    %154 = vmatpush1.msra.mxu0 0.0
    %155 = vmatprep.mubr.f32.mxu0 0.0
    %156 = vmatmul.mubr.f32.gmra.mrb[0].mxu0 %v89
    %v157 = vpop.f32.mrb[0].mxu0
    %v158 = vadd.f32 %v70, %v157
    %v159 = vpop.f32.mrb[0].mxu0
    %v160 = vadd.f32 %v74, %v159
    %161 = vdwg.mxu0
    %162 = vmatprep.subr.mxu0 %v52
    %163 = vmatpush1.msra.mxu0 %v51
    %164 = vmatprep.subr.mxu0 %v56
    %165 = vmatpush1.msra.mxu0 %v55
    %166 = vmatprep.subr.mxu0 %v60
    %167 = vmatpush1.msra.mxu0 %v59
    %168 = vmatprep.subr.mxu0 %v64
    %169 = vmatpush1.msra.mxu0 %v63
    %170 = vmatprep.subr.mxu0 0.0
    %171 = vmatpush1.msra.mxu0 0.0
    %172 = vmatprep.subr.mxu0 0.0
    %173 = vmatpush1.msra.mxu0 0.0
    %174 = vmatprep.subr.mxu0 0.0
    %175 = vmatpush1.msra.mxu0 0.0
    %176 = vmatprep.subr.mxu0 0.0
    %177 = vmatpush1.msra.mxu0 0.0
    %178 = vmatprep.subr.mxu0 0.0
    %179 = vmatpush1.msra.mxu0 0.0
    %180 = vmatprep.subr.mxu0 0.0
    %181 = vmatpush1.msra.mxu0 0.0
    %182 = vmatprep.subr.mxu0 0.0
    %183 = vmatpush1.msra.mxu0 0.0
    %184 = vmatprep.subr.mxu0 0.0
    %185 = vmatpush1.msra.mxu0 0.0
    %186 = vmatprep.subr.mxu0 0.0
    %187 = vmatpush1.msra.mxu0 0.0
    %188 = vmatprep.subr.mxu0 0.0
    %189 = vmatpush1.msra.mxu0 0.0
    %190 = vmatprep.subr.mxu0 0.0
    %191 = vmatpush1.msra.mxu0 0.0
    %192 = vmatprep.subr.mxu0 0.0
    %193 = vmatpush1.msra.mxu0 0.0
    %194 = vmatprep.subr.mxu0 0.0
    %195 = vmatpush1.msra.mxu0 0.0
    %196 = vmatprep.subr.mxu0 0.0
    %197 = vmatpush1.msra.mxu0 0.0
    %198 = vmatprep.subr.mxu0 0.0
    %199 = vmatpush1.msra.mxu0 0.0
    %200 = vmatprep.subr.mxu0 0.0
    %201 = vmatpush1.msra.mxu0 0.0
    %202 = vmatprep.subr.mxu0 0.0
    %203 = vmatpush1.msra.mxu0 0.0
    %204 = vmatprep.subr.mxu0 0.0
    %205 = vmatpush1.msra.mxu0 0.0
    %206 = vmatprep.subr.mxu0 0.0
    %207 = vmatpush1.msra.mxu0 0.0
    %208 = vmatprep.subr.mxu0 0.0
    %209 = vmatpush1.msra.mxu0 0.0
    %210 = vmatprep.subr.mxu0 0.0
    %211 = vmatpush1.msra.mxu0 0.0
    %212 = vmatprep.subr.mxu0 0.0
    %213 = vmatpush1.msra.mxu0 0.0
    %214 = vmatprep.subr.mxu0 0.0
    %215 = vmatpush1.msra.mxu0 0.0
    %216 = vmatprep.subr.mxu0 0.0
    %217 = vmatpush1.msra.mxu0 0.0
    %218 = vmatprep.subr.mxu0 0.0
    %219 = vmatpush1.msra.mxu0 0.0
    %220 = vmatprep.subr.mxu0 0.0
    %221 = vmatpush1.msra.mxu0 0.0
    %222 = vmatprep.subr.mxu0 0.0
    %223 = vmatpush1.msra.mxu0 0.0
    %224 = vmatprep.subr.mxu0 0.0
    %225 = vmatpush1.msra.mxu0 0.0
    %226 = vmatprep.mubr.f32.mxu0 0.0
    %227 = vmatmul.mubr.f32.gmra.mrb[0].mxu0 %v89
    %v228 = vpop.f32.mrb[0].mxu0
    %v229 = vadd.f32 %v78, %v228
    %v230 = vpop.f32.mrb[0].mxu0
    %v231 = vadd.f32 %v82, %v230
    %232 = vdwg.mxu0
    %vm233 = vcmp.ge.f32.partialorder %v158, 0.0
    %vm234 = vcmp.ge.f32.partialorder %v160, 0.0
    %vm235 = vcmp.ge.f32.partialorder %v229, 0.0
    %vm236 = vcmp.ge.f32.partialorder %v231, 0.0
    %v237 = vmul.f32 %v158, 0.1
    %v238 = vmul.f32 %v160, 0.1
    %v239 = vmul.f32 %v229, 0.1
    %v240 = vmul.f32 %v231, 0.1
    %v241 = vsel %vm233, %v158, %v237
    %v242 = vsel %vm234, %v160, %v238
    %v243 = vsel %vm235, %v229, %v239
    %v244 = vsel %vm236, %v231, %v240
    %v245 = vld [vmem:[%s3] sm:$0xf]
    %v247 = vlaneseq
    %v248 = vshrl.u32 %v247, 7
    %v249 = vsub.s32 0, %v248
    %v250 = vrot.slane %v245, %v249
    %v251 = vlaneseq
    %v252 = vshrl.u32 %v251, 7
    %v253 = vsub.s32 1, %v252
    %v254 = vrot.slane %v245, %v253
    %v255 = vlaneseq
    %v256 = vshrl.u32 %v255, 7
    %v257 = vsub.s32 2, %v256
    %v258 = vrot.slane %v245, %v257
    %v259 = vlaneseq
    %v260 = vshrl.u32 %v259, 7
    %v261 = vsub.s32 3, %v260
    %v262 = vrot.slane %v245, %v261
    %v267 = vmul.f32 %v241, %v250
    %v268 = vmul.f32 %v242, %v254
    %v269 = vmul.f32 %v243, %v258
    %v270 = vmul.f32 %v244, %v262
    %v271 = vadd.f32 %v267, %v268
    %v272 = vadd.f32 %v271, %v269
    %v273 = vadd.f32 %v272, %v270
    %274 = vadd.xlane.f32.xlu0 %v273
    %v275 = vpop.xlane.xlu0 %274
    %s276 = sld [smem:[#allocation2]]
    %v277 = vstv %s276
    %v278 = vadd.f32 %v275, %v277
    %v280 = vlaneseq
    %v281 = vand.u32 %v280, 127
    %v282 = vlaneseq
    %v283 = vshrl.u32 %v282, 7
    %v284 = vsub.s32 %v281, %v283
    %v285 = vrot.slane %v278, %v284
    %vm287 = vcmask 57344
    %288 = vst.msk [vmem:[#allocation8] sm:$0x1] %vm287, %v285
    // Predicated region
    $region30: #{_forward_cls_impl.1} parent=1 // pred_check
      _
    $region31: #{_forward_cls_impl.1} parent=1 // pred_check_branch
      %290 = sbr.rel (0) target = $region33
    $region32: #{_forward_cls_impl.1} parent=1 // pred_region
      %s292 = ssub.s32 16, 16
      %293 = vsyncadd [#allocation5], %s292
      %s295 = sshll.u32 [#allocation8], 4
      %s296 = int_to_ptr.vmem [resolvable:$true] %s295
      %298 = dma.vmem_to_hbm [thread:$0]  %s296, 16, %s5, [#allocation5]
    $region33: #{_forward_cls_impl.1} parent=1 // pred_fallthru
      _
    // Predicated region
    $region34: #{_forward_cls_impl.1} parent=1 // pred_check
      _
    $region35: #{_forward_cls_impl.1} parent=1 // pred_check_branch
      %300 = sbr.rel (0) target = $region37
    $region36: #{_forward_cls_impl.1} parent=1 // pred_region
      %301 = dma.done [#allocation5], 16
    $region37: #{_forward_cls_impl.1} parent=1 // pred_fallthru
      _
    %302 = vsyncpa [#allocation4], 1
    %303 = vsyncpa [#allocation7], 1
    %304 = vsyncpa [#allocation5], 1

</llo_original>
